<compile_context>
chip_gen: v5e
topology: v5e:2x2
jax: 0.10.0
libtpu: 0.0.40
codegen_flags: <defaults>
</compile_context>

<pallas_src>
import jax
import jax.numpy as jnp
from jax import lax
from jax.experimental import pallas as pl
from jax.experimental.pallas import tpu as pltpu


def _round_up(x, m):
    return (x + m - 1) // m * m


def _pick_band_rows(h, wp, max_lanes=2048):
    """Largest divisor of h whose band (rows * padded width) fits in max_lanes lanes."""
    best = 1
    for r in range(1, h + 1):
        if h % r == 0 and r * wp <= max_lanes:
            best = r
    return best


def _pick_vmem_limit():
    # Generation-aware scoped-VMEM budget: ~3/4 of physical VMEM
    # (~96 MiB on v5e/v6e with 128 MiB physical, ~48 MiB on v7x with 64 MiB).
    try:
        cap = getattr(pltpu.get_tpu_info(), "vmem_capacity_bytes", None)
        if cap:
            return int(cap) * 3 // 4
    except Exception:
        pass
    return 48 * 1024 * 1024


# ----------------------------------------------------------------------------------------
# Fused kernel: (conv3x3 + folded BN + ReLU) x 2 on one batch element per grid step.
# ----------------------------------------------------------------------------------------
def _make_kernel(H, Wp, Llin, band_rows, Cmid_p, Cout_p):
    band_n = band_rows * Wp                 # lanes per GEMM / per store (multiple of Wp)
    num_bands = H // band_rows
    tap_offs = tuple(ky * Wp + kx for ky in range(3) for kx in range(3))
    mid_base = Wp + 1                       # flat offset of padded row 1, col 0

    def kernel(x2_ref, x1_ref, w1a_ref, w1b_ref, b1_ref, w2_ref, b2_ref, mask_ref,
               o_ref, mid_ref):
        # x2_ref  : (C2_p, Llin)      linearized padded skip connection        (bf16)
        # x1_ref  : (C1_p, Llin)      linearized padded upsampled input        (bf16)
        # w1a_ref : (Cmid_p, 9*C2_p)  stacked-tap conv1 weights, x2 group (BN1 folded)
        # w1b_ref : (Cmid_p, 9*C1_p)  stacked-tap conv1 weights, x1 group (BN1 folded)
        # b1_ref  : (Cmid_p, 1)       folded BN1 bias (f32)
        # w2_ref  : (Cout_p, 9*Cmid_p) stacked-tap conv2 weights (BN2 folded)
        # b2_ref  : (Cout_p, 1)       folded BN2 bias (f32)
        # mask_ref: (1, band_n)       0/1 mask killing the conv-halo pad columns in a band
        # o_ref   : (Cout_p, H*Wp)    output, linearized padded-width rows
        # mid_ref : (Cmid_p, Llin)    VMEM scratch: mid activation, never hits HBM

        # Zero only the mid halo (guard + top pad row, bottom pad row + tail); the
        # interior pad columns are zeroed by the mask applied to every conv1 store.
        mid_ref[:, 0:mid_base] = jnp.zeros((Cmid_p, mid_base), mid_ref.dtype)
        mid_ref[:, mid_base + H * Wp:Llin] = jnp.zeros(
            (Cmid_p, Llin - (mid_base + H * Wp)), mid_ref.dtype)

        w1a = w1a_ref[...]
        w1b = w1b_ref[...]
        w2 = w2_ref[...]
        # Hoist bias / mask broadcasts out of the band loops (JAX does not CSE them).
        b1b = jnp.broadcast_to(b1_ref[...], (Cmid_p, band_n))
        b2b = jnp.broadcast_to(b2_ref[...], (Cout_p, band_n))
        maskb = jnp.broadcast_to(mask_ref[...], (Cmid_p, band_n))

        def stacked_taps(ref, p0):
            # (9*C, band_n): sublane-concat of the 9 shifted tap slices -> one GEMM with
            # contraction K = 9*C instead of 9 small K=C matmuls.
            return jnp.concatenate(
                [ref[:, p0 + o:p0 + o + band_n] for o in tap_offs], axis=0)

        # conv1 (+BN+ReLU): one lane-dense GEMM per row band; contraction split over the
        # two concat groups (x2 channels first, then upsampled x1 channels).
        for b in range(num_bands):                       # static -> fully unrolled
            p0 = b * band_n
            acc = jnp.dot(w1a, stacked_taps(x2_ref, p0),
                          preferred_element_type=jnp.float32)
            acc = acc + jnp.dot(w1b, stacked_taps(x1_ref, p0),
                                preferred_element_type=jnp.float32)
            y = jnp.maximum(acc + b1b, 0.0) * maskb
            mid_ref[:, mid_base + p0:mid_base + p0 + band_n] = y.astype(mid_ref.dtype)

        # conv2 (+BN+ReLU): consumes the VMEM-resident mid, writes lane-dense output bands.
        for b in range(num_bands):
            p0 = b * band_n
            acc = jnp.dot(w2, stacked_taps(mid_ref, p0),
                          preferred_element_type=jnp.float32)
            y = jnp.maximum(acc + b2b, 0.0)
            o_ref[:, p0:p0 + band_n] = y.astype(o_ref.dtype)

    return kernel


def fused_double_conv(x2_lin, x1_lin, w1a, w1b, b1, w2, b2, mask, *,
                      H, Wp, band_rows, out_dtype=jnp.float32):
    N, C2_p, Llin = x2_lin.shape
    C1_p = x1_lin.shape[1]
    Cmid_p = w1a.shape[0]
    Cout_p = w2.shape[0]
    band_n = band_rows * Wp

    # TODO(synk): for very large images, also tile H at the grid level (row bands with a
    # 2-row halo) so per-step blocks stay within v7x's 64 MiB VMEM; whole-image blocks
    # per batch element are fine at typical UNet decoder sizes.
    kernel = _make_kernel(H, Wp, Llin, band_rows, Cmid_p, Cout_p)
    return pl.pallas_call(
        kernel,
        out_shape=jax.ShapeDtypeStruct((N, Cout_p, H * Wp), out_dtype),
        grid_spec=pltpu.PrefetchScalarGridSpec(
            num_scalar_prefetch=0,
            grid=(N,),
            in_specs=[
                pl.BlockSpec((None, C2_p, Llin), lambda n: (n, 0, 0)),
                pl.BlockSpec((None, C1_p, Llin), lambda n: (n, 0, 0)),
                pl.BlockSpec((Cmid_p, 9 * C2_p), lambda n: (0, 0)),
                pl.BlockSpec((Cmid_p, 9 * C1_p), lambda n: (0, 0)),
                pl.BlockSpec((Cmid_p, 1), lambda n: (0, 0)),
                pl.BlockSpec((Cout_p, 9 * Cmid_p), lambda n: (0, 0)),
                pl.BlockSpec((Cout_p, 1), lambda n: (0, 0)),
                pl.BlockSpec((1, band_n), lambda n: (0, 0)),
            ],
            out_specs=pl.BlockSpec((None, Cout_p, H * Wp), lambda n: (n, 0, 0)),
            scratch_shapes=[pltpu.VMEM((Cmid_p, Llin), x2_lin.dtype)],
        ),
        compiler_params=pltpu.CompilerParams(
            dimension_semantics=("parallel",),       # batch shards across TensorCores
            vmem_limit_bytes=_pick_vmem_limit(),
        ),
    )(x2_lin, x1_lin, w1a, w1b, b1, w2, b2, mask)


# ----------------------------------------------------------------------------------------
# Host-side glue: bilinear upsample (align_corners=True), halo pad + linearize, BN folding.
# ----------------------------------------------------------------------------------------
def _interp_matrix_align_corners(n_in, n_out):
    if n_out == 1:
        return jnp.zeros((1, n_in), jnp.float32).at[0, 0].set(1.0)
    src = jnp.arange(n_out, dtype=jnp.float32) * (n_in - 1) / (n_out - 1)
    lo = jnp.clip(jnp.floor(src).astype(jnp.int32), 0, n_in - 1)
    hi = jnp.minimum(lo + 1, n_in - 1)
    frac = src - lo.astype(jnp.float32)
    return ((1.0 - frac)[:, None] * jax.nn.one_hot(lo, n_in, dtype=jnp.float32)
            + frac[:, None] * jax.nn.one_hot(hi, n_in, dtype=jnp.float32))


def _linearize(x_nchw, c_pad, llin, dtype):
    """NCHW -> (N, c_pad, llin): zero-pad channels, 1-pixel spatial halo, flatten rows,
    add a 1-element front guard + zero tail so every 3x3 tap is a plain lane slice."""
    N, C, H, W = x_nchw.shape
    xp = jnp.pad(x_nchw, ((0, 0), (0, c_pad - C), (1, 1), (1, 1)))
    xf = xp.reshape(N, c_pad, (H + 2) * (W + 2))
    xf = jnp.pad(xf, ((0, 0), (0, 0), (1, llin - 1 - (H + 2) * (W + 2))))
    return xf.astype(dtype)


def _prep_w(w_oihw, scale, c_in_pad, c_out_pad, dtype):
    """Fold BN scale, zero-pad channels, emit stacked-tap layout (Cout_p, 9*Cin_p) whose
    column order matches the kernel's tap stacking (tap = ky*3+kx, then input channel)."""
    O, I = w_oihw.shape[0], w_oihw.shape[1]
    w = w_oihw * scale[:, None, None, None]
    w = jnp.pad(w, ((0, c_out_pad - O), (0, c_in_pad - I), (0, 0), (0, 0)))
    return jnp.transpose(w, (0, 2, 3, 1)).reshape(c_out_pad, 9 * c_in_pad).astype(dtype)


def _prep_b(bias, c_out_pad):
    return jnp.pad(bias, (0, c_out_pad - bias.shape[0])).reshape(c_out_pad, 1).astype(jnp.float32)


def up_forward(x1_nchw, x2_nchw, params, *, compute_dtype=jnp.bfloat16,
               out_dtype=jnp.float32):
    N, C1, H1, W1 = x1_nchw.shape
    _, C2, H2, W2 = x2_nchw.shape

    # nn.Upsample(scale_factor=2, mode='bilinear', align_corners=True)
    # TODO(synk): the upsample still runs as an XLA einsum; it could be folded into the
    # kernel (two small interpolation matmuls) to remove one more HBM pass.
    Ah = _interp_matrix_align_corners(H1, 2 * H1)
    Aw = _interp_matrix_align_corners(W1, 2 * W1)
    x1u = jnp.einsum('oh,pw,nchw->ncop', Ah, Aw, x1_nchw)

    # F.pad(x1, [dX//2, dX-dX//2, dY//2, dY-dY//2]) so x1 matches x2's spatial size
    dY = H2 - x1u.shape[2]
    dX = W2 - x1u.shape[3]
    x1u = jnp.pad(x1u, ((0, 0), (0, 0), (dY // 2, dY - dY // 2), (dX // 2, dX - dX // 2)))

    H, W = H2, W2
    Wp = W + 2
    Llin = _round_up((H + 2) * Wp + 2, 128)

    Cmid = params['w1'].shape[0]
    Cout = params['w2'].shape[0]
    C2_p, C1_p = _round_up(C2, 16), _round_up(C1, 16)
    Cmid_p, Cout_p = _round_up(Cmid, 16), _round_up(Cout, 8)

    # torch.cat([x2, x1], dim=1) is never materialized: conv1's contraction is split over
    # the two channel groups inside the kernel (x2 channels first, then upsampled x1).
    x2_lin = _linearize(x2_nchw, C2_p, Llin, compute_dtype)
    x1_lin = _linearize(x1u, C1_p, Llin, compute_dtype)

    # TODO(synk): BatchNorm is eval-mode only (running stats folded into the weights);
    # training-mode batch statistics are not reproduced.
    w1a = _prep_w(params['w1'][:, :C2], params['scale1'], C2_p, Cmid_p, compute_dtype)
    w1b = _prep_w(params['w1'][:, C2:], params['scale1'], C1_p, Cmid_p, compute_dtype)
    b1 = _prep_b(params['bias1'], Cmid_p)
    w2 = _prep_w(params['w2'], params['scale2'], Cmid_p, Cout_p, compute_dtype)
    b2 = _prep_b(params['bias2'], Cout_p)

    band_rows = _pick_band_rows(H, Wp)
    band_n = band_rows * Wp
    col = jnp.arange(band_n, dtype=jnp.int32) % Wp
    mask = ((col >= 1) & (col <= W)).astype(jnp.float32).reshape(1, band_n)

    y = fused_double_conv(x2_lin, x1_lin, w1a, w1b, b1, w2, b2, mask,
                          H=H, Wp=Wp, band_rows=band_rows, out_dtype=out_dtype)

    # The kernel already emits NCHW (channels on sublanes, flattened (H, Wp) on lanes);
    # just drop the conv-halo pad columns and any padded output channels.
    return y.reshape(N, Cout_p, H, Wp)[:, :Cout, :, 1:W + 1]


# ----------------------------------------------------------------------------------------
# Deterministic synthetic parameters (BN running stats folded)
# ----------------------------------------------------------------------------------------
def init_up_params(key, in_channels, out_channels, eps=1e-5):
    mid = in_channels // 2
    ks = jax.random.split(key, 10)

    def fold_bn(gamma, beta, mean, var):
        s = gamma / jnp.sqrt(var + eps)
        return s, beta - mean * s

    w1 = 0.1 * jax.random.normal(ks[0], (mid, in_channels, 3, 3), jnp.float32)
    g1 = 1.0 + 0.1 * jax.random.normal(ks[1], (mid,), jnp.float32)
    b1 = 0.1 * jax.random.normal(ks[2], (mid,), jnp.float32)
    m1 = 0.1 * jax.random.normal(ks[3], (mid,), jnp.float32)
    v1 = jnp.abs(jax.random.normal(ks[4], (mid,), jnp.float32)) + 0.5
    s1, bb1 = fold_bn(g1, b1, m1, v1)

    w2 = 0.1 * jax.random.normal(ks[5], (out_channels, mid, 3, 3), jnp.float32)
    g2 = 1.0 + 0.1 * jax.random.normal(ks[6], (out_channels,), jnp.float32)
    b2 = 0.1 * jax.random.normal(ks[7], (out_channels,), jnp.float32)
    m2 = 0.1 * jax.random.normal(ks[8], (out_channels,), jnp.float32)
    v2 = jnp.abs(jax.random.normal(ks[9], (out_channels,), jnp.float32)) + 0.5
    s2, bb2 = fold_bn(g2, b2, m2, v2)

    return {'w1': w1, 'scale1': s1, 'bias1': bb1,
            'w2': w2, 'scale2': s2, 'bias2': bb2}


# ----------------------------------------------------------------------------------------
# Plain-JAX f32 reference (for self-check)
# ----------------------------------------------------------------------------------------
def up_forward_ref(x1_nchw, x2_nchw, params):
    N, C1, H1, W1 = x1_nchw.shape
    Ah = _interp_matrix_align_corners(H1, 2 * H1)
    Aw = _interp_matrix_align_corners(W1, 2 * W1)
    x1u = jnp.einsum('oh,pw,nchw->ncop', Ah, Aw, x1_nchw)
    dY = x2_nchw.shape[2] - x1u.shape[2]
    dX = x2_nchw.shape[3] - x1u.shape[3]
    x1u = jnp.pad(x1u, ((0, 0), (0, 0), (dY // 2, dY - dY // 2), (dX // 2, dX - dX // 2)))
    x = jnp.concatenate([x2_nchw, x1u], axis=1)

    def conv_bn_relu(h, w, s, b):
        y = lax.conv_general_dilated(h, w, (1, 1), 'SAME',
                                     dimension_numbers=('NCHW', 'OIHW', 'NCHW'))
        return jnp.maximum(y * s[None, :, None, None] + b[None, :, None, None], 0.0)

    y = conv_bn_relu(x, params['w1'], params['scale1'], params['bias1'])
    return conv_bn_relu(y, params['w2'], params['scale2'], params['bias2'])


if __name__ == "__main__":
    key = jax.random.PRNGKey(0)
    k_x1, k_x2, k_p = jax.random.split(key, 3)

    in_channels, out_channels = 8, 8          # Up(8, 8, bilinear=True) -> mid_channels = 4
    N, H1, W1 = 2, 8, 8
    x1 = jax.random.normal(k_x1, (N, in_channels // 2, H1, W1), jnp.float32)
    x2 = jax.random.normal(k_x2, (N, in_channels // 2, 2 * H1, 2 * W1), jnp.float32)
    params = init_up_params(k_p, in_channels, out_channels)

    out = jax.block_until_ready(jax.jit(up_forward)(x1, x2, params))
    ref = jax.block_until_ready(up_forward_ref(x1, x2, params))

    assert out.shape == (N, out_channels, 2 * H1, 2 * W1), out.shape
    # bf16 MXU inputs with f32 accumulation -> slightly looser tolerance than pure f32
    err = float(jnp.max(jnp.abs(out - ref)))
    assert jnp.allclose(out, ref, atol=3e-2, rtol=3e-2), err
    print("KERNEL_OK")
</pallas_src>

<mosaic_0001>
module attributes {stable_mosaic.version = 11 : i64} {
  func.func @kernel(%arg0: i32, %arg1: memref<1x16x384xbf16, #tpu.memory_space<vmem>>, %arg2: memref<1x16x384xbf16, #tpu.memory_space<vmem>>, %arg3: memref<16x144xbf16, #tpu.memory_space<vmem>>, %arg4: memref<16x144xbf16, #tpu.memory_space<vmem>>, %arg5: memref<16x1xf32, #tpu.memory_space<vmem>>, %arg6: memref<8x144xbf16, #tpu.memory_space<vmem>>, %arg7: memref<8x1xf32, #tpu.memory_space<vmem>>, %arg8: memref<1x288xf32, #tpu.memory_space<vmem>>, %arg9: memref<1x8x288xf32, #tpu.memory_space<vmem>>, %arg10: memref<16x384xbf16, #tpu.memory_space<vmem>>) attributes {dimension_semantics = [#tpu.dimension_semantics<parallel>], iteration_bounds = array<i64: 2>, scalar_prefetch = 0 : i64, scratch_operands = 1 : i64, tpu.core_type = #tpu.core_type<tc>, window_params = [{transform_indices = @transform_0, window_bounds = array<i64: 1, 16, 384>}, {transform_indices = @transform_1, window_bounds = array<i64: 1, 16, 384>}, {pipeline_mode = #tpu.pipeline_mode<synchronous>, transform_indices = @transform_2, window_bounds = array<i64: 16, 144>}, {pipeline_mode = #tpu.pipeline_mode<synchronous>, transform_indices = @transform_3, window_bounds = array<i64: 16, 144>}, {pipeline_mode = #tpu.pipeline_mode<synchronous>, transform_indices = @transform_4, window_bounds = array<i64: 16, 1>}, {pipeline_mode = #tpu.pipeline_mode<synchronous>, transform_indices = @transform_5, window_bounds = array<i64: 8, 144>}, {pipeline_mode = #tpu.pipeline_mode<synchronous>, transform_indices = @transform_6, window_bounds = array<i64: 8, 1>}, {pipeline_mode = #tpu.pipeline_mode<synchronous>, transform_indices = @transform_7, window_bounds = array<i64: 1, 288>}, {transform_indices = @transform_8, window_bounds = array<i64: 1, 8, 288>}]} {
    %cst = arith.constant 0.000000e+00 : bf16
    %0 = vector.broadcast %cst : bf16 to vector<16x19xbf16>
    %c0 = arith.constant 0 : index
    %c0_0 = arith.constant 0 : index
    %1 = vector.load %arg10[%c0, %c0_0] : memref<16x384xbf16, #tpu.memory_space<vmem>>, vector<16x19xbf16>
    tpu.vector_store %arg10[%c0, %c0_0], %0 {strides = array<i32>} : memref<16x384xbf16, #tpu.memory_space<vmem>>, vector<16x19xbf16>,
    %cst_1 = arith.constant 0.000000e+00 : bf16
    %2 = vector.broadcast %cst_1 : bf16 to vector<16x77xbf16>
    %c0_2 = arith.constant 0 : index
    %c307 = arith.constant 307 : index
    %3 = vector.load %arg10[%c0_2, %c307] : memref<16x384xbf16, #tpu.memory_space<vmem>>, vector<16x77xbf16>
    tpu.vector_store %arg10[%c0_2, %c307], %2 {strides = array<i32>} : memref<16x384xbf16, #tpu.memory_space<vmem>>, vector<16x77xbf16>,
    %c0_3 = arith.constant 0 : index
    %c0_4 = arith.constant 0 : index
    %4 = vector.load %arg3[%c0_3, %c0_4] : memref<16x144xbf16, #tpu.memory_space<vmem>>, vector<16x144xbf16>
    %c0_5 = arith.constant 0 : index
    %c0_6 = arith.constant 0 : index
    %5 = vector.load %arg4[%c0_5, %c0_6] : memref<16x144xbf16, #tpu.memory_space<vmem>>, vector<16x144xbf16>
    %c0_7 = arith.constant 0 : index
    %c0_8 = arith.constant 0 : index
    %6 = vector.load %arg6[%c0_7, %c0_8] : memref<8x144xbf16, #tpu.memory_space<vmem>>, vector<8x144xbf16>
    %c0_9 = arith.constant 0 : index
    %c0_10 = arith.constant 0 : index
    %7 = vector.load %arg5[%c0_9, %c0_10] : memref<16x1xf32, #tpu.memory_space<vmem>>, vector<16x1xf32>
    %8 = vector.shape_cast %7 : vector<16x1xf32> to vector<16x1xf32>
    %9 = vector.broadcast %8 : vector<16x1xf32> to vector<16x288xf32>
    %c0_11 = arith.constant 0 : index
    %c0_12 = arith.constant 0 : index
    %10 = vector.load %arg7[%c0_11, %c0_12] : memref<8x1xf32, #tpu.memory_space<vmem>>, vector<8x1xf32>
    %11 = vector.shape_cast %10 : vector<8x1xf32> to vector<8x1xf32>
    %12 = vector.broadcast %11 : vector<8x1xf32> to vector<8x288xf32>
    %c0_13 = arith.constant 0 : index
    %c0_14 = arith.constant 0 : index
    %13 = vector.load %arg8[%c0_13, %c0_14] : memref<1x288xf32, #tpu.memory_space<vmem>>, vector<1x288xf32>
    %14 = vector.shape_cast %13 : vector<1x288xf32> to vector<1x288xf32>
    %15 = vector.broadcast %14 : vector<1x288xf32> to vector<16x288xf32>
    %c0_15 = arith.constant 0 : index
    %c0_16 = arith.constant 0 : index
    %c0_17 = arith.constant 0 : index
    %16 = vector.load %arg1[%c0_15, %c0_16, %c0_17] : memref<1x16x384xbf16, #tpu.memory_space<vmem>>, vector<1x16x288xbf16>
    %17 = vector.shape_cast %16 : vector<1x16x288xbf16> to vector<16x288xbf16>
    %c0_18 = arith.constant 0 : index
    %c0_19 = arith.constant 0 : index
    %c1 = arith.constant 1 : index
    %18 = vector.load %arg1[%c0_18, %c0_19, %c1] : memref<1x16x384xbf16, #tpu.memory_space<vmem>>, vector<1x16x288xbf16>
    %19 = vector.shape_cast %18 : vector<1x16x288xbf16> to vector<16x288xbf16>
    %c0_20 = arith.constant 0 : index
    %c0_21 = arith.constant 0 : index
    %c2 = arith.constant 2 : index
    %20 = vector.load %arg1[%c0_20, %c0_21, %c2] : memref<1x16x384xbf16, #tpu.memory_space<vmem>>, vector<1x16x288xbf16>
    %21 = vector.shape_cast %20 : vector<1x16x288xbf16> to vector<16x288xbf16>
    %c0_22 = arith.constant 0 : index
    %c0_23 = arith.constant 0 : index
    %c18 = arith.constant 18 : index
    %22 = vector.load %arg1[%c0_22, %c0_23, %c18] : memref<1x16x384xbf16, #tpu.memory_space<vmem>>, vector<1x16x288xbf16>
    %23 = vector.shape_cast %22 : vector<1x16x288xbf16> to vector<16x288xbf16>
    %c0_24 = arith.constant 0 : index
    %c0_25 = arith.constant 0 : index
    %c19 = arith.constant 19 : index
    %24 = vector.load %arg1[%c0_24, %c0_25, %c19] : memref<1x16x384xbf16, #tpu.memory_space<vmem>>, vector<1x16x288xbf16>
    %25 = vector.shape_cast %24 : vector<1x16x288xbf16> to vector<16x288xbf16>
    %c0_26 = arith.constant 0 : index
    %c0_27 = arith.constant 0 : index
    %c20 = arith.constant 20 : index
    %26 = vector.load %arg1[%c0_26, %c0_27, %c20] : memref<1x16x384xbf16, #tpu.memory_space<vmem>>, vector<1x16x288xbf16>
    %27 = vector.shape_cast %26 : vector<1x16x288xbf16> to vector<16x288xbf16>
    %c0_28 = arith.constant 0 : index
    %c0_29 = arith.constant 0 : index
    %c36 = arith.constant 36 : index
    %28 = vector.load %arg1[%c0_28, %c0_29, %c36] : memref<1x16x384xbf16, #tpu.memory_space<vmem>>, vector<1x16x288xbf16>
    %29 = vector.shape_cast %28 : vector<1x16x288xbf16> to vector<16x288xbf16>
    %c0_30 = arith.constant 0 : index
    %c0_31 = arith.constant 0 : index
    %c37 = arith.constant 37 : index
    %30 = vector.load %arg1[%c0_30, %c0_31, %c37] : memref<1x16x384xbf16, #tpu.memory_space<vmem>>, vector<1x16x288xbf16>
    %31 = vector.shape_cast %30 : vector<1x16x288xbf16> to vector<16x288xbf16>
    %c0_32 = arith.constant 0 : index
    %c0_33 = arith.constant 0 : index
    %c38 = arith.constant 38 : index
    %32 = vector.load %arg1[%c0_32, %c0_33, %c38] : memref<1x16x384xbf16, #tpu.memory_space<vmem>>, vector<1x16x288xbf16>
    %33 = vector.shape_cast %32 : vector<1x16x288xbf16> to vector<16x288xbf16>
    %34 = tpu.concatenate %17, %19, %21, %23, %25, %27, %29, %31, %33 in 0 : vector<16x288xbf16>, vector<16x288xbf16>, vector<16x288xbf16>, vector<16x288xbf16>, vector<16x288xbf16>, vector<16x288xbf16>, vector<16x288xbf16>, vector<16x288xbf16>, vector<16x288xbf16> -> vector<144x288xbf16>
    %cst_34 = arith.constant dense<0.000000e+00> : vector<16x288xf32>
    %35 = tpu.matmul %4, %34, %cst_34 {dimension_numbers = #tpu.dot_dimension_numbers<[1], [0], [0], [1], [0, 0, 1, 1], [], []>} : vector<16x144xbf16>, vector<144x288xbf16>, vector<16x288xf32> -> vector<16x288xf32>
    %c0_35 = arith.constant 0 : index
    %c0_36 = arith.constant 0 : index
    %c0_37 = arith.constant 0 : index
    %36 = vector.load %arg2[%c0_35, %c0_36, %c0_37] : memref<1x16x384xbf16, #tpu.memory_space<vmem>>, vector<1x16x288xbf16>
    %37 = vector.shape_cast %36 : vector<1x16x288xbf16> to vector<16x288xbf16>
    %c0_38 = arith.constant 0 : index
    %c0_39 = arith.constant 0 : index
    %c1_40 = arith.constant 1 : index
    %38 = vector.load %arg2[%c0_38, %c0_39, %c1_40] : memref<1x16x384xbf16, #tpu.memory_space<vmem>>, vector<1x16x288xbf16>
    %39 = vector.shape_cast %38 : vector<1x16x288xbf16> to vector<16x288xbf16>
    %c0_41 = arith.constant 0 : index
    %c0_42 = arith.constant 0 : index
    %c2_43 = arith.constant 2 : index
    %40 = vector.load %arg2[%c0_41, %c0_42, %c2_43] : memref<1x16x384xbf16, #tpu.memory_space<vmem>>, vector<1x16x288xbf16>
    %41 = vector.shape_cast %40 : vector<1x16x288xbf16> to vector<16x288xbf16>
    %c0_44 = arith.constant 0 : index
    %c0_45 = arith.constant 0 : index
    %c18_46 = arith.constant 18 : index
    %42 = vector.load %arg2[%c0_44, %c0_45, %c18_46] : memref<1x16x384xbf16, #tpu.memory_space<vmem>>, vector<1x16x288xbf16>
    %43 = vector.shape_cast %42 : vector<1x16x288xbf16> to vector<16x288xbf16>
    %c0_47 = arith.constant 0 : index
    %c0_48 = arith.constant 0 : index
    %c19_49 = arith.constant 19 : index
    %44 = vector.load %arg2[%c0_47, %c0_48, %c19_49] : memref<1x16x384xbf16, #tpu.memory_space<vmem>>, vector<1x16x288xbf16>
    %45 = vector.shape_cast %44 : vector<1x16x288xbf16> to vector<16x288xbf16>
    %c0_50 = arith.constant 0 : index
    %c0_51 = arith.constant 0 : index
    %c20_52 = arith.constant 20 : index
    %46 = vector.load %arg2[%c0_50, %c0_51, %c20_52] : memref<1x16x384xbf16, #tpu.memory_space<vmem>>, vector<1x16x288xbf16>
    %47 = vector.shape_cast %46 : vector<1x16x288xbf16> to vector<16x288xbf16>
    %c0_53 = arith.constant 0 : index
    %c0_54 = arith.constant 0 : index
    %c36_55 = arith.constant 36 : index
    %48 = vector.load %arg2[%c0_53, %c0_54, %c36_55] : memref<1x16x384xbf16, #tpu.memory_space<vmem>>, vector<1x16x288xbf16>
    %49 = vector.shape_cast %48 : vector<1x16x288xbf16> to vector<16x288xbf16>
    %c0_56 = arith.constant 0 : index
    %c0_57 = arith.constant 0 : index
    %c37_58 = arith.constant 37 : index
    %50 = vector.load %arg2[%c0_56, %c0_57, %c37_58] : memref<1x16x384xbf16, #tpu.memory_space<vmem>>, vector<1x16x288xbf16>
    %51 = vector.shape_cast %50 : vector<1x16x288xbf16> to vector<16x288xbf16>
    %c0_59 = arith.constant 0 : index
    %c0_60 = arith.constant 0 : index
    %c38_61 = arith.constant 38 : index
    %52 = vector.load %arg2[%c0_59, %c0_60, %c38_61] : memref<1x16x384xbf16, #tpu.memory_space<vmem>>, vector<1x16x288xbf16>
    %53 = vector.shape_cast %52 : vector<1x16x288xbf16> to vector<16x288xbf16>
    %54 = tpu.concatenate %37, %39, %41, %43, %45, %47, %49, %51, %53 in 0 : vector<16x288xbf16>, vector<16x288xbf16>, vector<16x288xbf16>, vector<16x288xbf16>, vector<16x288xbf16>, vector<16x288xbf16>, vector<16x288xbf16>, vector<16x288xbf16>, vector<16x288xbf16> -> vector<144x288xbf16>
    %cst_62 = arith.constant dense<0.000000e+00> : vector<16x288xf32>
    %55 = tpu.matmul %5, %54, %cst_62 {dimension_numbers = #tpu.dot_dimension_numbers<[1], [0], [0], [1], [0, 0, 1, 1], [], []>} : vector<16x144xbf16>, vector<144x288xbf16>, vector<16x288xf32> -> vector<16x288xf32>
    %56 = arith.addf %35, %55 : vector<16x288xf32>
    %57 = arith.addf %56, %9 : vector<16x288xf32>
    %cst_63 = arith.constant 0.000000e+00 : f32
    %58 = vector.broadcast %cst_63 : f32 to vector<16x288xf32>
    %59 = arith.maximumf %57, %58 : vector<16x288xf32>
    %60 = arith.mulf %59, %15 : vector<16x288xf32>
    %61 = arith.truncf %60 : vector<16x288xf32> to vector<16x288xbf16>
    %c0_64 = arith.constant 0 : index
    %c19_65 = arith.constant 19 : index
    %62 = vector.load %arg10[%c0_64, %c19_65] : memref<16x384xbf16, #tpu.memory_space<vmem>>, vector<16x288xbf16>
    tpu.vector_store %arg10[%c0_64, %c19_65], %61 {strides = array<i32>} : memref<16x384xbf16, #tpu.memory_space<vmem>>, vector<16x288xbf16>,
    %c0_66 = arith.constant 0 : index
    %c0_67 = arith.constant 0 : index
    %63 = vector.load %arg10[%c0_66, %c0_67] : memref<16x384xbf16, #tpu.memory_space<vmem>>, vector<16x288xbf16>
    %c0_68 = arith.constant 0 : index
    %c1_69 = arith.constant 1 : index
    %64 = vector.load %arg10[%c0_68, %c1_69] : memref<16x384xbf16, #tpu.memory_space<vmem>>, vector<16x288xbf16>
    %c0_70 = arith.constant 0 : index
    %c2_71 = arith.constant 2 : index
    %65 = vector.load %arg10[%c0_70, %c2_71] : memref<16x384xbf16, #tpu.memory_space<vmem>>, vector<16x288xbf16>
    %c0_72 = arith.constant 0 : index
    %c18_73 = arith.constant 18 : index
    %66 = vector.load %arg10[%c0_72, %c18_73] : memref<16x384xbf16, #tpu.memory_space<vmem>>, vector<16x288xbf16>
    %c0_74 = arith.constant 0 : index
    %c19_75 = arith.constant 19 : index
    %67 = vector.load %arg10[%c0_74, %c19_75] : memref<16x384xbf16, #tpu.memory_space<vmem>>, vector<16x288xbf16>
    %c0_76 = arith.constant 0 : index
    %c20_77 = arith.constant 20 : index
    %68 = vector.load %arg10[%c0_76, %c20_77] : memref<16x384xbf16, #tpu.memory_space<vmem>>, vector<16x288xbf16>
    %c0_78 = arith.constant 0 : index
    %c36_79 = arith.constant 36 : index
    %69 = vector.load %arg10[%c0_78, %c36_79] : memref<16x384xbf16, #tpu.memory_space<vmem>>, vector<16x288xbf16>
    %c0_80 = arith.constant 0 : index
    %c37_81 = arith.constant 37 : index
    %70 = vector.load %arg10[%c0_80, %c37_81] : memref<16x384xbf16, #tpu.memory_space<vmem>>, vector<16x288xbf16>
    %c0_82 = arith.constant 0 : index
    %c38_83 = arith.constant 38 : index
    %71 = vector.load %arg10[%c0_82, %c38_83] : memref<16x384xbf16, #tpu.memory_space<vmem>>, vector<16x288xbf16>
    %72 = tpu.concatenate %63, %64, %65, %66, %67, %68, %69, %70, %71 in 0 : vector<16x288xbf16>, vector<16x288xbf16>, vector<16x288xbf16>, vector<16x288xbf16>, vector<16x288xbf16>, vector<16x288xbf16>, vector<16x288xbf16>, vector<16x288xbf16>, vector<16x288xbf16> -> vector<144x288xbf16>
    %cst_84 = arith.constant dense<0.000000e+00> : vector<8x288xf32>
    %73 = tpu.matmul %6, %72, %cst_84 {dimension_numbers = #tpu.dot_dimension_numbers<[1], [0], [0], [1], [0, 0, 1, 1], [], []>} : vector<8x144xbf16>, vector<144x288xbf16>, vector<8x288xf32> -> vector<8x288xf32>
    %74 = arith.addf %73, %12 : vector<8x288xf32>
    %cst_85 = arith.constant 0.000000e+00 : f32
    %75 = vector.broadcast %cst_85 : f32 to vector<8x288xf32>
    %76 = arith.maximumf %74, %75 : vector<8x288xf32>
    %c0_86 = arith.constant 0 : index
    %c0_87 = arith.constant 0 : index
    %c0_88 = arith.constant 0 : index
    %77 = vector.load %arg9[%c0_86, %c0_87, %c0_88] : memref<1x8x288xf32, #tpu.memory_space<vmem>>, vector<1x8x288xf32>
    %78 = vector.shape_cast %77 : vector<1x8x288xf32> to vector<8x288xf32>
    %79 = vector.shape_cast %76 : vector<8x288xf32> to vector<1x8x288xf32>
    tpu.vector_store %arg9[%c0_86, %c0_87, %c0_88], %79 {strides = array<i32>} : memref<1x8x288xf32, #tpu.memory_space<vmem>>, vector<1x8x288xf32>,
    return
  }
  func.func @transform_0(%arg0: i32) -> (i32, i32, i32) {
    %c0_i32 = arith.constant 0 : i32
    %c0_i32_0 = arith.constant 0 : i32
    %c0_i32_1 = arith.constant 0 : i32
    return %arg0, %c0_i32, %c0_i32_0 : i32, i32, i32
  }
  func.func @transform_1(%arg0: i32) -> (i32, i32, i32) {
    %c0_i32 = arith.constant 0 : i32
    %c0_i32_0 = arith.constant 0 : i32
    %c0_i32_1 = arith.constant 0 : i32
    return %arg0, %c0_i32, %c0_i32_0 : i32, i32, i32
  }
  func.func @transform_2(%arg0: i32) -> (i32, i32) {
    %c0_i32 = arith.constant 0 : i32
    %c0_i32_0 = arith.constant 0 : i32
    %c0_i32_1 = arith.constant 0 : i32
    return %c0_i32, %c0_i32_0 : i32, i32
  }
  func.func @transform_3(%arg0: i32) -> (i32, i32) {
    %c0_i32 = arith.constant 0 : i32
    %c0_i32_0 = arith.constant 0 : i32
    %c0_i32_1 = arith.constant 0 : i32
    return %c0_i32, %c0_i32_0 : i32, i32
  }
  func.func @transform_4(%arg0: i32) -> (i32, i32) {
    %c0_i32 = arith.constant 0 : i32
    %c0_i32_0 = arith.constant 0 : i32
    %c0_i32_1 = arith.constant 0 : i32
    return %c0_i32, %c0_i32_0 : i32, i32
  }
  func.func @transform_5(%arg0: i32) -> (i32, i32) {
    %c0_i32 = arith.constant 0 : i32
    %c0_i32_0 = arith.constant 0 : i32
    %c0_i32_1 = arith.constant 0 : i32
    return %c0_i32, %c0_i32_0 : i32, i32
  }
  func.func @transform_6(%arg0: i32) -> (i32, i32) {
    %c0_i32 = arith.constant 0 : i32
    %c0_i32_0 = arith.constant 0 : i32
    %c0_i32_1 = arith.constant 0 : i32
    return %c0_i32, %c0_i32_0 : i32, i32
  }
  func.func @transform_7(%arg0: i32) -> (i32, i32) {
    %c0_i32 = arith.constant 0 : i32
    %c0_i32_0 = arith.constant 0 : i32
    %c0_i32_1 = arith.constant 0 : i32
    return %c0_i32, %c0_i32_0 : i32, i32
  }
  func.func @transform_8(%arg0: i32) -> (i32, i32, i32) {
    %c0_i32 = arith.constant 0 : i32
    %c0_i32_0 = arith.constant 0 : i32
    %c0_i32_1 = arith.constant 0 : i32
    return %arg0, %c0_i32, %c0_i32_0 : i32, i32, i32
  }
}

</mosaic_0001>

<llo_original>
// kernel: up_forward.1
$region0: #{up_forward.1}
  #allocation0 [shape = 'u32[]', space=smem, size = 0x4, offset = 0x4, fixed_abs, tag = 'smem constant byte address 0x4 - core index']
  #allocation1 [shape = 'u32[72,128]{1,0:T(1,128)}', space=vmem, size = 0x9000, scoped, tag = 'internal scratch']
  #allocation2 [shape = 'bf16[16,384]{1,0:T(8,128)(2,1)}', space=vmem, size = 0x3000, scoped, tag = 'scratch operand']
  %s0 = inlined_call_operand.vmem [shape: bf16[2,16,384], index: 0, kind: input, shape index: {}]
  %s1 = inlined_call_operand.vmem [shape: bf16[2,16,384], index: 1, kind: input, shape index: {}]
  %s2 = inlined_call_operand.vmem [shape: bf16[16,144], index: 2, kind: input, shape index: {}]
  %s3 = inlined_call_operand.vmem [shape: bf16[16,144], index: 3, kind: input, shape index: {}]
  %s4 = inlined_call_operand.vmem [shape: f32[16,1], index: 4, kind: input, shape index: {}]
  %s5 = inlined_call_operand.vmem [shape: bf16[8,144], index: 5, kind: input, shape index: {}]
  %s6 = inlined_call_operand.vmem [shape: f32[8,1], index: 6, kind: input, shape index: {}]
  %s7 = inlined_call_operand.vmem [shape: f32[1,288], index: 7, kind: input, shape index: {}]
  %s8 = inlined_call_operand.vmem [shape: f32[2,8,288], index: 8, kind: output, shape index: {}]
  %s9 = sld [smem:[#allocation0]]
  $region65: #{up_forward.1} parent=0
    _
  %s11 = ssub.s32 1, %s9
  %s12 = scalar_select 0, %s11, %s9
  loop: start=0, step=1, limit=4
  $region2: #{up_forward.1} parent=0 // loop_pre_header
    _
  $region3: #{up_forward.1} parent=0 // loop_header
    %s14 = sphi 0, %s18
    %p15 = scmp.ge.s32.totalorder %s14, 4
    %s24 = sphi 0, %s26
    %s27 = sphi 0, %s24
    %s28 = sphi 0, %s27
    %s44 = sphi 0, %s28
    %s50 = sphi 0, %s52
    %s53 = sphi 0, %s50
    %s54 = sphi 0, %s53
    %s70 = sphi 0, %s54
    %s74 = sphi 0, %s74
    %s76 = sphi 0, %s74
    %s77 = sphi 0, %s76
    %s91 = sphi 0, %s77
    %s95 = sphi 0, %s95
    %s97 = sphi 0, %s95
    %s98 = sphi 0, %s97
    %s112 = sphi 0, %s98
    %s116 = sphi 0, %s116
    %s118 = sphi 0, %s116
    %s119 = sphi 0, %s118
    %s133 = sphi 0, %s119
    %s137 = sphi 0, %s137
    %s139 = sphi 0, %s137
    %s140 = sphi 0, %s139
    %s154 = sphi 0, %s140
    %s158 = sphi 0, %s158
    %s160 = sphi 0, %s158
    %s161 = sphi 0, %s160
    %s175 = sphi 0, %s161
    %s179 = sphi 0, %s179
    %s181 = sphi 0, %s179
    %s182 = sphi 0, %s181
    %s196 = sphi 0, %s182
    %s202 = sphi 0, %s204
    %s205 = sphi 0, %s202
    %s206 = sphi 0, %s205
    %s222 = sphi 0, %s206
  $region4: #{up_forward.1} parent=0 // loop_header_branch
    %17 = sbr.rel (%p15) target = $region8
  $region5: #{up_forward.1} parent=0 // loop_body
    %s19 = ssub.s32 %s14, 1
    %s20 = ssub.s32 %s14, 2
    %s21 = sadd.s32 %s14, 1
    %s22 = ssub.s32 %s14, %s21
    %p23 = scmp.eq.s32.totalorder %s22, 0
    %s25 = sadd.s32 %s24, 1
    %s26 = scalar_select %p23, %s24, %s25
    %p29 = pneg %p23
    %p30 = scmp.eq.s32.totalorder %s14, 1
    %p31 = por %p29, %p30
    %p32 = scmp.ne.s32.totalorder %s24, %s27
    %p33 = scmp.eq.s32.totalorder %s14, 0
    %p34 = por %p32, %p33
    %p35 = scmp.ne.s32.totalorder %s24, %s27
    %p36 = scmp.eq.s32.totalorder %s19, 1
    %p37 = por %p35, %p36
    %p38 = scmp.ne.s32.totalorder %s27, %s28
    %p39 = scmp.eq.s32.totalorder %s19, 0
    %p40 = por %p38, %p39
    %p41 = scmp.ne.s32.totalorder %s27, %s28
    %p42 = scmp.eq.s32.totalorder %s20, 1
    %p43 = por %p41, %p42
    %p45 = scmp.ne.s32.totalorder %s28, %s44
    %p46 = scmp.eq.s32.totalorder %s20, 0
    %p47 = por %p45, %p46
    %s48 = ssub.s32 %s14, %s21
    %p49 = scmp.eq.s32.totalorder %s48, 0
    %s51 = sadd.s32 %s50, 1
    %s52 = scalar_select %p49, %s50, %s51
    %p55 = pneg %p49
    %p56 = scmp.eq.s32.totalorder %s14, 1
    %p57 = por %p55, %p56
    %p58 = scmp.ne.s32.totalorder %s50, %s53
    %p59 = scmp.eq.s32.totalorder %s14, 0
    %p60 = por %p58, %p59
    %p61 = scmp.ne.s32.totalorder %s50, %s53
    %p62 = scmp.eq.s32.totalorder %s19, 1
    %p63 = por %p61, %p62
    %p64 = scmp.ne.s32.totalorder %s53, %s54
    %p65 = scmp.eq.s32.totalorder %s19, 0
    %p66 = por %p64, %p65
    %p67 = scmp.ne.s32.totalorder %s53, %s54
    %p68 = scmp.eq.s32.totalorder %s20, 1
    %p69 = por %p67, %p68
    %p71 = scmp.ne.s32.totalorder %s54, %s70
    %p72 = scmp.eq.s32.totalorder %s20, 0
    %p73 = por %p71, %p72
    %s75 = sadd.s32 %s74, 1
    %p78 = scmp.eq.s32.totalorder %s14, 1
    %p79 = scmp.ne.s32.totalorder %s74, %s76
    %p80 = scmp.eq.s32.totalorder %s14, 0
    %p81 = por %p79, %p80
    %p82 = scmp.ne.s32.totalorder %s74, %s76
    %p83 = scmp.eq.s32.totalorder %s19, 1
    %p84 = por %p82, %p83
    %p85 = scmp.ne.s32.totalorder %s76, %s77
    %p86 = scmp.eq.s32.totalorder %s19, 0
    %p87 = por %p85, %p86
    %p88 = scmp.ne.s32.totalorder %s76, %s77
    %p89 = scmp.eq.s32.totalorder %s20, 1
    %p90 = por %p88, %p89
    %p92 = scmp.ne.s32.totalorder %s77, %s91
    %p93 = scmp.eq.s32.totalorder %s20, 0
    %p94 = por %p92, %p93
    %s96 = sadd.s32 %s95, 1
    %p99 = scmp.eq.s32.totalorder %s14, 1
    %p100 = scmp.ne.s32.totalorder %s95, %s97
    %p101 = scmp.eq.s32.totalorder %s14, 0
    %p102 = por %p100, %p101
    %p103 = scmp.ne.s32.totalorder %s95, %s97
    %p104 = scmp.eq.s32.totalorder %s19, 1
    %p105 = por %p103, %p104
    %p106 = scmp.ne.s32.totalorder %s97, %s98
    %p107 = scmp.eq.s32.totalorder %s19, 0
    %p108 = por %p106, %p107
    %p109 = scmp.ne.s32.totalorder %s97, %s98
    %p110 = scmp.eq.s32.totalorder %s20, 1
    %p111 = por %p109, %p110
    %p113 = scmp.ne.s32.totalorder %s98, %s112
    %p114 = scmp.eq.s32.totalorder %s20, 0
    %p115 = por %p113, %p114
    %s117 = sadd.s32 %s116, 1
    %p120 = scmp.eq.s32.totalorder %s14, 1
    %p121 = scmp.ne.s32.totalorder %s116, %s118
    %p122 = scmp.eq.s32.totalorder %s14, 0
    %p123 = por %p121, %p122
    %p124 = scmp.ne.s32.totalorder %s116, %s118
    %p125 = scmp.eq.s32.totalorder %s19, 1
    %p126 = por %p124, %p125
    %p127 = scmp.ne.s32.totalorder %s118, %s119
    %p128 = scmp.eq.s32.totalorder %s19, 0
    %p129 = por %p127, %p128
    %p130 = scmp.ne.s32.totalorder %s118, %s119
    %p131 = scmp.eq.s32.totalorder %s20, 1
    %p132 = por %p130, %p131
    %p134 = scmp.ne.s32.totalorder %s119, %s133
    %p135 = scmp.eq.s32.totalorder %s20, 0
    %p136 = por %p134, %p135
    %s138 = sadd.s32 %s137, 1
    %p141 = scmp.eq.s32.totalorder %s14, 1
    %p142 = scmp.ne.s32.totalorder %s137, %s139
    %p143 = scmp.eq.s32.totalorder %s14, 0
    %p144 = por %p142, %p143
    %p145 = scmp.ne.s32.totalorder %s137, %s139
    %p146 = scmp.eq.s32.totalorder %s19, 1
    %p147 = por %p145, %p146
    %p148 = scmp.ne.s32.totalorder %s139, %s140
    %p149 = scmp.eq.s32.totalorder %s19, 0
    %p150 = por %p148, %p149
    %p151 = scmp.ne.s32.totalorder %s139, %s140
    %p152 = scmp.eq.s32.totalorder %s20, 1
    %p153 = por %p151, %p152
    %p155 = scmp.ne.s32.totalorder %s140, %s154
    %p156 = scmp.eq.s32.totalorder %s20, 0
    %p157 = por %p155, %p156
    %s159 = sadd.s32 %s158, 1
    %p162 = scmp.eq.s32.totalorder %s14, 1
    %p163 = scmp.ne.s32.totalorder %s158, %s160
    %p164 = scmp.eq.s32.totalorder %s14, 0
    %p165 = por %p163, %p164
    %p166 = scmp.ne.s32.totalorder %s158, %s160
    %p167 = scmp.eq.s32.totalorder %s19, 1
    %p168 = por %p166, %p167
    %p169 = scmp.ne.s32.totalorder %s160, %s161
    %p170 = scmp.eq.s32.totalorder %s19, 0
    %p171 = por %p169, %p170
    %p172 = scmp.ne.s32.totalorder %s160, %s161
    %p173 = scmp.eq.s32.totalorder %s20, 1
    %p174 = por %p172, %p173
    %p176 = scmp.ne.s32.totalorder %s161, %s175
    %p177 = scmp.eq.s32.totalorder %s20, 0
    %p178 = por %p176, %p177
    %s180 = sadd.s32 %s179, 1
    %p183 = scmp.eq.s32.totalorder %s14, 1
    %p184 = scmp.ne.s32.totalorder %s179, %s181
    %p185 = scmp.eq.s32.totalorder %s14, 0
    %p186 = por %p184, %p185
    %p187 = scmp.ne.s32.totalorder %s179, %s181
    %p188 = scmp.eq.s32.totalorder %s19, 1
    %p189 = por %p187, %p188
    %p190 = scmp.ne.s32.totalorder %s181, %s182
    %p191 = scmp.eq.s32.totalorder %s19, 0
    %p192 = por %p190, %p191
    %p193 = scmp.ne.s32.totalorder %s181, %s182
    %p194 = scmp.eq.s32.totalorder %s20, 1
    %p195 = por %p193, %p194
    %p197 = scmp.ne.s32.totalorder %s182, %s196
    %p198 = scmp.eq.s32.totalorder %s20, 0
    %p199 = por %p197, %p198
    %s200 = ssub.s32 %s14, %s21
    %p201 = scmp.eq.s32.totalorder %s200, 0
    %s203 = sadd.s32 %s202, 1
    %s204 = scalar_select %p201, %s202, %s203
    %p207 = pneg %p201
    %p208 = scmp.eq.s32.totalorder %s14, 1
    %p209 = por %p207, %p208
    %p210 = scmp.ne.s32.totalorder %s202, %s205
    %p211 = scmp.eq.s32.totalorder %s14, 0
    %p212 = por %p210, %p211
    %p213 = scmp.ne.s32.totalorder %s202, %s205
    %p214 = scmp.eq.s32.totalorder %s19, 1
    %p215 = por %p213, %p214
    %p216 = scmp.ne.s32.totalorder %s205, %s206
    %p217 = scmp.eq.s32.totalorder %s19, 0
    %p218 = por %p216, %p217
    %p219 = scmp.ne.s32.totalorder %s205, %s206
    %p220 = scmp.eq.s32.totalorder %s20, 1
    %p221 = por %p219, %p220
    %p223 = scmp.ne.s32.totalorder %s206, %s222
    %p224 = scmp.eq.s32.totalorder %s20, 0
    %p225 = por %p223, %p224
    %p226 = scmp.le.s32.totalorder 1, %s14
    %p227 = scmp.lt.s32.totalorder %s14, 3
    %p228 = pnand %p226, %p227
    %p229 = pneg %p228
    // Predicated region
    $region9: #{up_forward.1} parent=5 // pred_check
      _
    $region10: #{up_forward.1} parent=5 // pred_check_branch
      %231 = sbr.rel (%p228) target = $region12
    $region11: #{up_forward.1} parent=5 // pred_region
      %s232 = ssub.s32 %s14, 1
      // Predicated region
      $region13: #{up_forward.1} parent=11 // pred_check
        %p233 = pneg %p87
      $region14: #{up_forward.1} parent=11 // pred_check_branch
        %235 = sbr.rel (%p233) target = $region16
      $region15: #{up_forward.1} parent=11 // pred_region
        _
      $region16: #{up_forward.1} parent=11 // pred_fallthru
        _
      // Predicated region
      $region17: #{up_forward.1} parent=11 // pred_check
        %p236 = pneg %p108
      $region18: #{up_forward.1} parent=11 // pred_check_branch
        %238 = sbr.rel (%p236) target = $region20
      $region19: #{up_forward.1} parent=11 // pred_region
        _
      $region20: #{up_forward.1} parent=11 // pred_fallthru
        _
      // Predicated region
      $region21: #{up_forward.1} parent=11 // pred_check
        %p239 = pneg %p129
      $region22: #{up_forward.1} parent=11 // pred_check_branch
        %241 = sbr.rel (%p239) target = $region24
      $region23: #{up_forward.1} parent=11 // pred_region
        _
      $region24: #{up_forward.1} parent=11 // pred_fallthru
        _
      // Predicated region
      $region25: #{up_forward.1} parent=11 // pred_check
        %p242 = pneg %p150
      $region26: #{up_forward.1} parent=11 // pred_check_branch
        %244 = sbr.rel (%p242) target = $region28
      $region27: #{up_forward.1} parent=11 // pred_region
        _
      $region28: #{up_forward.1} parent=11 // pred_fallthru
        _
      // Predicated region
      $region29: #{up_forward.1} parent=11 // pred_check
        %p245 = pneg %p171
      $region30: #{up_forward.1} parent=11 // pred_check_branch
        %247 = sbr.rel (%p245) target = $region32
      $region31: #{up_forward.1} parent=11 // pred_region
        _
      $region32: #{up_forward.1} parent=11 // pred_fallthru
        _
      // Predicated region
      $region33: #{up_forward.1} parent=11 // pred_check
        %p248 = pneg %p192
      $region34: #{up_forward.1} parent=11 // pred_check_branch
        %250 = sbr.rel (%p248) target = $region36
      $region35: #{up_forward.1} parent=11 // pred_region
        _
      $region36: #{up_forward.1} parent=11 // pred_fallthru
        _
    $region12: #{up_forward.1} parent=5 // pred_fallthru
      _
    %p251 = scmp.lt.s32.totalorder %s14, 2
    // Predicated region
    $region37: #{up_forward.1} parent=5 // pred_check
      %p252 = pneg %p251
    $region38: #{up_forward.1} parent=5 // pred_check_branch
      %254 = sbr.rel (%p252) target = $region40
    $region39: #{up_forward.1} parent=5 // pred_region
      // Predicated region
      $region41: #{up_forward.1} parent=39 // pred_check
        %p255 = pneg %p34
      $region42: #{up_forward.1} parent=39 // pred_check_branch
        %257 = sbr.rel (%p255) target = $region44
      $region43: #{up_forward.1} parent=39 // pred_region
        %p258 = scmp.lt.s32.totalorder %s14, 1
        %s259 = scalar_select %p258, %s14, 1
        %s260 = smul.addr %s259, 6
        %s261 = smul.addr %s260, 4
        %s262 = scalar_lea.vmem %s0, %s261
      $region44: #{up_forward.1} parent=39 // pred_fallthru
        _
      // Predicated region
      $region45: #{up_forward.1} parent=39 // pred_check
        %p263 = pneg %p60
      $region46: #{up_forward.1} parent=39 // pred_check_branch
        %265 = sbr.rel (%p263) target = $region48
      $region47: #{up_forward.1} parent=39 // pred_region
        %p266 = scmp.lt.s32.totalorder %s14, 1
        %s267 = scalar_select %p266, %s14, 1
        %s268 = smul.addr %s267, 6
        %s269 = smul.addr %s268, 4
        %s270 = scalar_lea.vmem %s1, %s269
      $region48: #{up_forward.1} parent=39 // pred_fallthru
        _
    $region40: #{up_forward.1} parent=5 // pred_fallthru
      _
    %p271 = scmp.le.s32.totalorder 1, %s14
    %p272 = scmp.lt.s32.totalorder %s14, 3
    %p273 = pnand %p271, %p272
    %p274 = pneg %p273
    // Predicated region
    $region49: #{up_forward.1} parent=5 // pred_check
      _
    $region50: #{up_forward.1} parent=5 // pred_check_branch
      %276 = sbr.rel (%p273) target = $region52
    $region51: #{up_forward.1} parent=5 // pred_region
      %s277 = ssub.s32 %s14, 1
      %p278 = scmp.lt.s32.totalorder %s19, 1
      %s279 = scalar_select %p278, %s19, 1
      %s280 = smul.addr %s279, 6
      %s281 = smul.addr %s280, 4
      %s282 = scalar_lea.vmem %s0, %s281
      %p283 = pneg %p40
      %p284 = pneg %p37
      %p285 = scmp.lt.s32.totalorder %s19, 1
      %s286 = scalar_select %p285, %s19, 1
      %s287 = smul.addr %s286, 6
      %s288 = smul.addr %s287, 4
      %s289 = scalar_lea.vmem %s1, %s288
      %p290 = pneg %p66
      %p291 = pneg %p63
      %p292 = pneg %p87
      %p293 = pneg %p84
      %p294 = pneg %p108
      %p295 = pneg %p105
      %p296 = pneg %p129
      %p297 = pneg %p126
      %p298 = pneg %p150
      %p299 = pneg %p147
      %p300 = pneg %p171
      %p301 = pneg %p168
      %p302 = pneg %p192
      %p303 = pneg %p189
      %p304 = pneg %p218
      %p305 = pneg %p215
      %p306 = scmp.lt.s32.totalorder %s19, 1
      %s307 = scalar_select %p306, %s19, 1
      %s308 = smul.addr %s307, 3
      %s309 = smul.addr %s308, 8
      %s310 = scalar_lea.vmem %s8, %s309
      %p311 = scmp.lt.s32.totalorder %s19, 1
      %s312 = scalar_select %p311, %s19, 1
      %s313 = smul.addr %s312, 6
      %s314 = smul.addr %s313, 4
      %s315 = scalar_lea.vmem %s0, %s314
      %p316 = scmp.lt.s32.totalorder %s19, 1
      %s317 = scalar_select %p316, %s19, 1
      %s318 = smul.addr %s317, 6
      %s319 = smul.addr %s318, 4
      %s320 = scalar_lea.vmem %s1, %s319
      %p321 = scmp.lt.s32.totalorder %s19, 1
      %s322 = scalar_select %p321, %s19, 1
      %s323 = smul.addr %s322, 3
      %s324 = smul.addr %s323, 8
      %s325 = scalar_lea.vmem %s8, %s324
      %vm327 = vcmask 150528
      %328 = vst.msk [vmem:[#allocation2] sm:$0xf] %vm327, 0
      %329 = vst.msk [vmem:[#allocation2 + $0xc] sm:$0xf] %vm327, 0
      %vm330 = vcmask 1043864
      %331 = vst.msk [vmem:[#allocation2 + $0x8] sm:$0xf] %vm330, 0
      %332 = vst.msk [vmem:[#allocation2 + $0x14] sm:$0xf] %vm330, 0
      %v333 = vld [vmem:[%s2] sm:$0xff]
      %v334 = vld [vmem:[%s2 + $0x8] sm:$0xff]
      %v335 = vld [vmem:[%s3] sm:$0xff]
      %v336 = vld [vmem:[%s3 + $0x8] sm:$0xff]
      %v337 = vld [vmem:[%s5] sm:$0xff]
      %v338 = vld [vmem:[%s4] sm:$0xff]
      %v339 = vld [vmem:[%s4 + $0x8] sm:$0xff]
      %341 = vset.pattern.permute.xlu0 0
      %342 = vperm.xlu0 %341, %v338
      %v343 = vpop.permute.xlu0 %342
      %346 = vset.pattern.permute.xlu0 0
      %347 = vperm.xlu0 %346, %v339
      %v348 = vpop.permute.xlu0 %347
      %v350 = vld [vmem:[%s6] sm:$0xff]
      %352 = vset.pattern.permute.xlu0 0
      %353 = vperm.xlu0 %352, %v350
      %v354 = vpop.permute.xlu0 %353
      %v356 = vld [vmem:[%s7] sm:$0x7]
      %v358 = vperm.slane %v356, 0
      %v359 = vperm.slane %v356, 1
      %v360 = vperm.slane %v356, 2
      %v364 = vld [vmem:[%s315] sm:$0xff]
      %v365 = vld [vmem:[%s315 + $0x8] sm:$0xf]
      %v366 = vld [vmem:[%s315 + $0xc] sm:$0xff]
      %v367 = vld [vmem:[%s315 + $0x14] sm:$0xf]
      %v372 = vunpack.c.l.b16 %v364
      %v373 = vunpack.c.h.b16 %v364
      %v374 = vunpack.c.l.b16 %v365
      %v375 = vunpack.c.l.b16 %v366
      %v376 = vunpack.c.h.b16 %v366
      %v377 = vunpack.c.l.b16 %v367
      %v378 = vpack.c.b16 %v375, %v372
      %v379 = vpack.c.b16 %v376, %v373
      %v380 = vpack.c.b16 %v377, %v374
      %384 = vrot.lane.b32.xlu0 %v378, 127
      %v385 = vpop.permute.xlu0 %384
      %386 = vrot.lane.b32.xlu0 %v379, 127
      %v387 = vpop.permute.xlu0 %386
      %388 = vrot.lane.b32.xlu0 %v380, 127
      %v389 = vpop.permute.xlu0 %388
      %vm390 = vcmask 1039360
      %v391 = vsel %vm390, %v385, %v387
      %v392 = vsel %vm390, %v387, %v389
      %396 = vrot.lane.b32.xlu0 %v378, 126
      %v397 = vpop.permute.xlu0 %396
      %398 = vrot.lane.b32.xlu0 %v379, 126
      %v399 = vpop.permute.xlu0 %398
      %400 = vrot.lane.b32.xlu0 %v380, 126
      %v401 = vpop.permute.xlu0 %400
      %vm402 = vcmask 1031168
      %v403 = vsel %vm402, %v397, %v399
      %v404 = vsel %vm402, %v399, %v401
      %408 = vrot.lane.b32.xlu0 %v378, 110
      %v409 = vpop.permute.xlu0 %408
      %410 = vrot.lane.b32.xlu0 %v379, 110
      %v411 = vpop.permute.xlu0 %410
      %412 = vrot.lane.b32.xlu0 %v380, 110
      %v413 = vpop.permute.xlu0 %412
      %vm414 = vcmask 900096
      %v415 = vsel %vm414, %v409, %v411
      %v416 = vsel %vm414, %v411, %v413
      %420 = vrot.lane.b32.xlu0 %v378, 109
      %v421 = vpop.permute.xlu0 %420
      %422 = vrot.lane.b32.xlu0 %v379, 109
      %v423 = vpop.permute.xlu0 %422
      %424 = vrot.lane.b32.xlu0 %v380, 109
      %v425 = vpop.permute.xlu0 %424
      %vm426 = vcmask 891904
      %v427 = vsel %vm426, %v421, %v423
      %v428 = vsel %vm426, %v423, %v425
      %432 = vrot.lane.b32.xlu0 %v378, 108
      %v433 = vpop.permute.xlu0 %432
      %434 = vrot.lane.b32.xlu0 %v379, 108
      %v435 = vpop.permute.xlu0 %434
      %436 = vrot.lane.b32.xlu0 %v380, 108
      %v437 = vpop.permute.xlu0 %436
      %vm438 = vcmask 883712
      %v439 = vsel %vm438, %v433, %v435
      %v440 = vsel %vm438, %v435, %v437
      %444 = vrot.lane.b32.xlu0 %v378, 92
      %v445 = vpop.permute.xlu0 %444
      %446 = vrot.lane.b32.xlu0 %v379, 92
      %v447 = vpop.permute.xlu0 %446
      %448 = vrot.lane.b32.xlu0 %v380, 92
      %v449 = vpop.permute.xlu0 %448
      %vm450 = vcmask 752640
      %v451 = vsel %vm450, %v445, %v447
      %v452 = vsel %vm450, %v447, %v449
      %456 = vrot.lane.b32.xlu0 %v378, 91
      %v457 = vpop.permute.xlu0 %456
      %458 = vrot.lane.b32.xlu0 %v379, 91
      %v459 = vpop.permute.xlu0 %458
      %460 = vrot.lane.b32.xlu0 %v380, 91
      %v461 = vpop.permute.xlu0 %460
      %vm462 = vcmask 744448
      %v463 = vsel %vm462, %v457, %v459
      %v464 = vsel %vm462, %v459, %v461
      %468 = vrot.lane.b32.xlu0 %v378, 90
      %v469 = vpop.permute.xlu0 %468
      %470 = vrot.lane.b32.xlu0 %v379, 90
      %v471 = vpop.permute.xlu0 %470
      %472 = vrot.lane.b32.xlu0 %v380, 90
      %v473 = vpop.permute.xlu0 %472
      %vm474 = vcmask 736256
      %v475 = vsel %vm474, %v469, %v471
      %v476 = vsel %vm474, %v471, %v473
      %v480 = vld [vmem:[%s320] sm:$0xff]
      %v481 = vld [vmem:[%s320 + $0x8] sm:$0xf]
      %v482 = vld [vmem:[%s320 + $0xc] sm:$0xff]
      %v483 = vld [vmem:[%s320 + $0x14] sm:$0xf]
      %v488 = vunpack.c.l.b16 %v480
      %v489 = vunpack.c.h.b16 %v480
      %v490 = vunpack.c.l.b16 %v481
      %v491 = vunpack.c.l.b16 %v482
      %v492 = vunpack.c.h.b16 %v482
      %v493 = vunpack.c.l.b16 %v483
      %v494 = vpack.c.b16 %v491, %v488
      %v495 = vpack.c.b16 %v492, %v489
      %v496 = vpack.c.b16 %v493, %v490
      %500 = vrot.lane.b32.xlu0 %v494, 127
      %v501 = vpop.permute.xlu0 %500
      %502 = vrot.lane.b32.xlu0 %v495, 127
      %v503 = vpop.permute.xlu0 %502
      %504 = vrot.lane.b32.xlu0 %v496, 127
      %v505 = vpop.permute.xlu0 %504
      %v506 = vsel %vm390, %v501, %v503
      %v507 = vsel %vm390, %v503, %v505
      %511 = vrot.lane.b32.xlu0 %v494, 126
      %v512 = vpop.permute.xlu0 %511
      %513 = vrot.lane.b32.xlu0 %v495, 126
      %v514 = vpop.permute.xlu0 %513
      %515 = vrot.lane.b32.xlu0 %v496, 126
      %v516 = vpop.permute.xlu0 %515
      %v517 = vsel %vm402, %v512, %v514
      %v518 = vsel %vm402, %v514, %v516
      %522 = vrot.lane.b32.xlu0 %v494, 110
      %v523 = vpop.permute.xlu0 %522
      %524 = vrot.lane.b32.xlu0 %v495, 110
      %v525 = vpop.permute.xlu0 %524
      %526 = vrot.lane.b32.xlu0 %v496, 110
      %v527 = vpop.permute.xlu0 %526
      %v528 = vsel %vm414, %v523, %v525
      %v529 = vsel %vm414, %v525, %v527
      %533 = vrot.lane.b32.xlu0 %v494, 109
      %v534 = vpop.permute.xlu0 %533
      %535 = vrot.lane.b32.xlu0 %v495, 109
      %v536 = vpop.permute.xlu0 %535
      %537 = vrot.lane.b32.xlu0 %v496, 109
      %v538 = vpop.permute.xlu0 %537
      %v539 = vsel %vm426, %v534, %v536
      %v540 = vsel %vm426, %v536, %v538
      %544 = vrot.lane.b32.xlu0 %v494, 108
      %v545 = vpop.permute.xlu0 %544
      %546 = vrot.lane.b32.xlu0 %v495, 108
      %v547 = vpop.permute.xlu0 %546
      %548 = vrot.lane.b32.xlu0 %v496, 108
      %v549 = vpop.permute.xlu0 %548
      %v550 = vsel %vm438, %v545, %v547
      %v551 = vsel %vm438, %v547, %v549
      %555 = vrot.lane.b32.xlu0 %v494, 92
      %v556 = vpop.permute.xlu0 %555
      %557 = vrot.lane.b32.xlu0 %v495, 92
      %v558 = vpop.permute.xlu0 %557
      %559 = vrot.lane.b32.xlu0 %v496, 92
      %v560 = vpop.permute.xlu0 %559
      %v561 = vsel %vm450, %v556, %v558
      %v562 = vsel %vm450, %v558, %v560
      %566 = vrot.lane.b32.xlu0 %v494, 91
      %v567 = vpop.permute.xlu0 %566
      %568 = vrot.lane.b32.xlu0 %v495, 91
      %v569 = vpop.permute.xlu0 %568
      %570 = vrot.lane.b32.xlu0 %v496, 91
      %v571 = vpop.permute.xlu0 %570
      %v572 = vsel %vm462, %v567, %v569
      %v573 = vsel %vm462, %v569, %v571
      %577 = vrot.lane.b32.xlu0 %v494, 90
      %v578 = vpop.permute.xlu0 %577
      %579 = vrot.lane.b32.xlu0 %v495, 90
      %v580 = vpop.permute.xlu0 %579
      %581 = vrot.lane.b32.xlu0 %v496, 90
      %v582 = vpop.permute.xlu0 %581
      %v583 = vsel %vm474, %v578, %v580
      %v584 = vsel %vm474, %v580, %v582
      %v590 = vunpack.c.l.b16 %v335
      %v591 = vunpack.c.h.b16 %v335
      %v592 = vunpack.c.l.b16 %v336
      %v593 = vunpack.c.h.b16 %v336
      %v594 = vpack.c.b16 %v592, %v590
      %v595 = vpack.c.b16 %v593, %v591
      %vm597 = vcmask 130048
      %v599 = vsel %vm597, %v595, 0
      %601 = vmatpush.bf16.msra.mxu0 %v572
      %602 = vmatpush.bf16.msra.mxu0 %v561
      %603 = vmatpush.bf16.msra.mxu0 %v550
      %604 = vmatpush.bf16.msra.mxu0 %v539
      %605 = vmatpush.bf16.msra.mxu0 %v528
      %606 = vmatpush.bf16.msra.mxu0 %v517
      %607 = vmatpush.bf16.msra.mxu0 %v506
      %608 = vmatpush.bf16.msra.mxu0 %v494
      %609 = vmatmul.bf16.gmra.mxu0 %v594
      %v610 = vpop.f32.mrf.mxu0
      %v611 = vadd.f32 0.0, %v610
      %v612 = vpop.f32.mrf.mxu0
      %v613 = vadd.f32 0.0, %v612
      %614 = vdwg.mxu0
      %615 = vmatpush.bf16.msra.mxu0 0
      %616 = vmatpush.bf16.msra.mxu0 0
      %617 = vmatpush.bf16.msra.mxu0 0
      %618 = vmatpush.bf16.msra.mxu0 0
      %619 = vmatpush.bf16.msra.mxu0 0
      %620 = vmatpush.bf16.msra.mxu0 0
      %621 = vmatpush.bf16.msra.mxu0 0
      %622 = vmatpush.bf16.msra.mxu0 %v583
      %623 = vmatmul.bf16.gmra.mxu0 %v599
      %v624 = vpop.f32.mrf.mxu0
      %v625 = vadd.f32 %v611, %v624
      %v626 = vpop.f32.mrf.mxu0
      %v627 = vadd.f32 %v613, %v626
      %628 = vdwg.mxu0
      %629 = vmatpush.bf16.msra.mxu0 %v573
      %630 = vmatpush.bf16.msra.mxu0 %v562
      %631 = vmatpush.bf16.msra.mxu0 %v551
      %632 = vmatpush.bf16.msra.mxu0 %v540
      %633 = vmatpush.bf16.msra.mxu0 %v529
      %634 = vmatpush.bf16.msra.mxu0 %v518
      %635 = vmatpush.bf16.msra.mxu0 %v507
      %636 = vmatpush.bf16.msra.mxu0 %v495
      %637 = vmatmul.bf16.gmra.mxu0 %v594
      %v638 = vpop.f32.mrf.mxu0
      %v639 = vadd.f32 0.0, %v638
      %v640 = vpop.f32.mrf.mxu0
      %v641 = vadd.f32 0.0, %v640
      %642 = vdwg.mxu0
      %643 = vmatpush.bf16.msra.mxu0 0
      %644 = vmatpush.bf16.msra.mxu0 0
      %645 = vmatpush.bf16.msra.mxu0 0
      %646 = vmatpush.bf16.msra.mxu0 0
      %647 = vmatpush.bf16.msra.mxu0 0
      %648 = vmatpush.bf16.msra.mxu0 0
      %649 = vmatpush.bf16.msra.mxu0 0
      %650 = vmatpush.bf16.msra.mxu0 %v584
      %651 = vmatmul.bf16.gmra.mxu0 %v599
      %v652 = vpop.f32.mrf.mxu0
      %v653 = vadd.f32 %v639, %v652
      %v654 = vpop.f32.mrf.mxu0
      %v655 = vadd.f32 %v641, %v654
      %656 = vdwg.mxu0
      %657 = vmatpush.bf16.msra.mxu0 %v571
      %658 = vmatpush.bf16.msra.mxu0 %v560
      %659 = vmatpush.bf16.msra.mxu0 %v549
      %660 = vmatpush.bf16.msra.mxu0 %v538
      %661 = vmatpush.bf16.msra.mxu0 %v527
      %662 = vmatpush.bf16.msra.mxu0 %v516
      %663 = vmatpush.bf16.msra.mxu0 %v505
      %664 = vmatpush.bf16.msra.mxu0 %v496
      %665 = vmatmul.bf16.gmra.mxu0 %v594
      %v666 = vpop.f32.mrf.mxu0
      %v667 = vadd.f32 0.0, %v666
      %v668 = vpop.f32.mrf.mxu0
      %v669 = vadd.f32 0.0, %v668
      %670 = vdwg.mxu0
      %671 = vmatpush.bf16.msra.mxu0 0
      %672 = vmatpush.bf16.msra.mxu0 0
      %673 = vmatpush.bf16.msra.mxu0 0
      %674 = vmatpush.bf16.msra.mxu0 0
      %675 = vmatpush.bf16.msra.mxu0 0
      %676 = vmatpush.bf16.msra.mxu0 0
      %677 = vmatpush.bf16.msra.mxu0 0
      %678 = vmatpush.bf16.msra.mxu0 %v582
      %679 = vmatmul.bf16.gmra.mxu0 %v599
      %v680 = vpop.f32.mrf.mxu0
      %v681 = vadd.f32 %v667, %v680
      %v682 = vpop.f32.mrf.mxu0
      %v683 = vadd.f32 %v669, %v682
      %684 = vdwg.mxu0
      %v687 = vunpack.c.l.b16 %v333
      %v688 = vunpack.c.h.b16 %v333
      %v689 = vunpack.c.l.b16 %v334
      %v690 = vunpack.c.h.b16 %v334
      %v691 = vpack.c.b16 %v689, %v687
      %v692 = vpack.c.b16 %v690, %v688
      %v695 = vsel %vm597, %v692, 0
      %697 = vmatpush.bf16.msra.mxu0 %v463
      %698 = vmatpush.bf16.msra.mxu0 %v451
      %699 = vmatpush.bf16.msra.mxu0 %v439
      %700 = vmatpush.bf16.msra.mxu0 %v427
      %701 = vmatpush.bf16.msra.mxu0 %v415
      %702 = vmatpush.bf16.msra.mxu0 %v403
      %703 = vmatpush.bf16.msra.mxu0 %v391
      %704 = vmatpush.bf16.msra.mxu0 %v378
      %705 = vmatmul.bf16.gmra.mxu0 %v691
      %v706 = vpop.f32.mrf.mxu0
      %v707 = vadd.f32 %v625, %v706
      %v708 = vpop.f32.mrf.mxu0
      %v709 = vadd.f32 %v627, %v708
      %710 = vdwg.mxu0
      %711 = vmatpush.bf16.msra.mxu0 0
      %712 = vmatpush.bf16.msra.mxu0 0
      %713 = vmatpush.bf16.msra.mxu0 0
      %714 = vmatpush.bf16.msra.mxu0 0
      %715 = vmatpush.bf16.msra.mxu0 0
      %716 = vmatpush.bf16.msra.mxu0 0
      %717 = vmatpush.bf16.msra.mxu0 0
      %718 = vmatpush.bf16.msra.mxu0 %v475
      %719 = vmatmul.bf16.gmra.mxu0 %v695
      %v720 = vpop.f32.mrf.mxu0
      %v721 = vadd.f32 %v707, %v720
      %v722 = vpop.f32.mrf.mxu0
      %v723 = vadd.f32 %v709, %v722
      %724 = vdwg.mxu0
      %725 = vmatpush.bf16.msra.mxu0 %v464
      %726 = vmatpush.bf16.msra.mxu0 %v452
      %727 = vmatpush.bf16.msra.mxu0 %v440
      %728 = vmatpush.bf16.msra.mxu0 %v428
      %729 = vmatpush.bf16.msra.mxu0 %v416
      %730 = vmatpush.bf16.msra.mxu0 %v404
      %731 = vmatpush.bf16.msra.mxu0 %v392
      %732 = vmatpush.bf16.msra.mxu0 %v379
      %733 = vmatmul.bf16.gmra.mxu0 %v691
      %v734 = vpop.f32.mrf.mxu0
      %v735 = vadd.f32 %v653, %v734
      %v736 = vpop.f32.mrf.mxu0
      %v737 = vadd.f32 %v655, %v736
      %738 = vdwg.mxu0
      %739 = vmatpush.bf16.msra.mxu0 0
      %740 = vmatpush.bf16.msra.mxu0 0
      %741 = vmatpush.bf16.msra.mxu0 0
      %742 = vmatpush.bf16.msra.mxu0 0
      %743 = vmatpush.bf16.msra.mxu0 0
      %744 = vmatpush.bf16.msra.mxu0 0
      %745 = vmatpush.bf16.msra.mxu0 0
      %746 = vmatpush.bf16.msra.mxu0 %v476
      %747 = vmatmul.bf16.gmra.mxu0 %v695
      %v748 = vpop.f32.mrf.mxu0
      %v749 = vadd.f32 %v735, %v748
      %v750 = vpop.f32.mrf.mxu0
      %v751 = vadd.f32 %v737, %v750
      %752 = vdwg.mxu0
      %753 = vmatpush.bf16.msra.mxu0 %v461
      %754 = vmatpush.bf16.msra.mxu0 %v449
      %755 = vmatpush.bf16.msra.mxu0 %v437
      %756 = vmatpush.bf16.msra.mxu0 %v425
      %757 = vmatpush.bf16.msra.mxu0 %v413
      %758 = vmatpush.bf16.msra.mxu0 %v401
      %759 = vmatpush.bf16.msra.mxu0 %v389
      %760 = vmatpush.bf16.msra.mxu0 %v380
      %761 = vmatmul.bf16.gmra.mxu0 %v691
      %v762 = vpop.f32.mrf.mxu0
      %v763 = vadd.f32 %v681, %v762
      %v764 = vpop.f32.mrf.mxu0
      %v765 = vadd.f32 %v683, %v764
      %766 = vdwg.mxu0
      %767 = vmatpush.bf16.msra.mxu0 0
      %768 = vmatpush.bf16.msra.mxu0 0
      %769 = vmatpush.bf16.msra.mxu0 0
      %770 = vmatpush.bf16.msra.mxu0 0
      %771 = vmatpush.bf16.msra.mxu0 0
      %772 = vmatpush.bf16.msra.mxu0 0
      %773 = vmatpush.bf16.msra.mxu0 0
      %774 = vmatpush.bf16.msra.mxu0 %v473
      %775 = vmatmul.bf16.gmra.mxu0 %v695
      %v776 = vpop.f32.mrf.mxu0
      %v777 = vadd.f32 %v763, %v776
      %v778 = vpop.f32.mrf.mxu0
      %v779 = vadd.f32 %v765, %v778
      %780 = vdwg.mxu0
      %v781 = vadd.f32 %v721, %v343
      %v782 = vadd.f32 %v749, %v343
      %v783 = vadd.f32 %v777, %v343
      %v784 = vadd.f32 %v723, %v348
      %v785 = vadd.f32 %v751, %v348
      %v786 = vadd.f32 %v779, %v348
      %v787 = vmax.f32 %v781, 0.0
      %v788 = vmax.f32 %v782, 0.0
      %v789 = vmax.f32 %v783, 0.0
      %v790 = vmax.f32 %v784, 0.0
      %v791 = vmax.f32 %v785, 0.0
      %v792 = vmax.f32 %v786, 0.0
      %v793 = vmul.f32 %v787, %v358
      %v794 = vmul.f32 %v788, %v359
      %v795 = vmul.f32 %v789, %v360
      %v796 = vmul.f32 %v790, %v358
      %v797 = vmul.f32 %v791, %v359
      %v798 = vmul.f32 %v792, %v360
      %v799 = vpack.c.bf16 %v794, %v793
      %v800 = vpack.c.bf16 %v795, %v795
      %v801 = vpack.c.bf16 %v797, %v796
      %v802 = vpack.c.bf16 %v798, %v798
      %807 = vrot.lane.b32.xlu0 %v799, 19
      %v808 = vpop.permute.xlu0 %807
      %809 = vrot.lane.b32.xlu0 %v800, 19
      %v810 = vpop.permute.xlu0 %809
      %811 = vrot.lane.b32.xlu0 %v801, 19
      %v812 = vpop.permute.xlu0 %811
      %813 = vrot.lane.b32.xlu0 %v802, 19
      %v814 = vpop.permute.xlu0 %813
      %v815 = vrot.slane %v808, 4
      %v816 = vrot.slane %v812, 4
      %vm817 = vcmask 154624
      %v818 = vsel %vm817, %v815, %v808
      %v819 = vsel %vm817, %v815, %v810
      %v820 = vsel %vm817, %v816, %v812
      %v821 = vsel %vm817, %v816, %v814
      %vm826 = vcmask 1043608
      %vm827 = vcmask 1047556
      %vm828 = vmor %vm827, %vm826
      %829 = vst.msk [vmem:[#allocation2] sm:$0xff] %vm828, %v818
      %vm830 = vcmask 412672
      %831 = vst.msk [vmem:[#allocation2 + $0x8] sm:$0xf] %vm830, %v819
      %832 = vst.msk [vmem:[#allocation2 + $0xc] sm:$0xff] %vm828, %v820
      %833 = vst.msk [vmem:[#allocation2 + $0x14] sm:$0xf] %vm830, %v821
      %v834 = vld [vmem:[#allocation2] sm:$0xff]
      %v835 = vld [vmem:[#allocation2 + $0x8] sm:$0xf]
      %v836 = vld [vmem:[#allocation2 + $0xc] sm:$0xff]
      %v837 = vld [vmem:[#allocation2 + $0x14] sm:$0xf]
      %v842 = vunpack.c.l.b16 %v834
      %v843 = vunpack.c.h.b16 %v834
      %v844 = vunpack.c.l.b16 %v835
      %v845 = vunpack.c.l.b16 %v836
      %v846 = vunpack.c.h.b16 %v836
      %v847 = vunpack.c.l.b16 %v837
      %v848 = vpack.c.b16 %v845, %v842
      %v849 = vpack.c.b16 %v846, %v843
      %v850 = vpack.c.b16 %v847, %v844
      %854 = vrot.lane.b32.xlu0 %v848, 127
      %v855 = vpop.permute.xlu0 %854
      %856 = vrot.lane.b32.xlu0 %v849, 127
      %v857 = vpop.permute.xlu0 %856
      %858 = vrot.lane.b32.xlu0 %v850, 127
      %v859 = vpop.permute.xlu0 %858
      %v860 = vsel %vm390, %v855, %v857
      %v861 = vsel %vm390, %v857, %v859
      %865 = vrot.lane.b32.xlu0 %v848, 126
      %v866 = vpop.permute.xlu0 %865
      %867 = vrot.lane.b32.xlu0 %v849, 126
      %v868 = vpop.permute.xlu0 %867
      %869 = vrot.lane.b32.xlu0 %v850, 126
      %v870 = vpop.permute.xlu0 %869
      %v871 = vsel %vm402, %v866, %v868
      %v872 = vsel %vm402, %v868, %v870
      %876 = vrot.lane.b32.xlu0 %v848, 110
      %v877 = vpop.permute.xlu0 %876
      %878 = vrot.lane.b32.xlu0 %v849, 110
      %v879 = vpop.permute.xlu0 %878
      %880 = vrot.lane.b32.xlu0 %v850, 110
      %v881 = vpop.permute.xlu0 %880
      %v882 = vsel %vm414, %v877, %v879
      %v883 = vsel %vm414, %v879, %v881
      %887 = vrot.lane.b32.xlu0 %v848, 109
      %v888 = vpop.permute.xlu0 %887
      %889 = vrot.lane.b32.xlu0 %v849, 109
      %v890 = vpop.permute.xlu0 %889
      %891 = vrot.lane.b32.xlu0 %v850, 109
      %v892 = vpop.permute.xlu0 %891
      %v893 = vsel %vm426, %v888, %v890
      %v894 = vsel %vm426, %v890, %v892
      %898 = vrot.lane.b32.xlu0 %v848, 108
      %v899 = vpop.permute.xlu0 %898
      %900 = vrot.lane.b32.xlu0 %v849, 108
      %v901 = vpop.permute.xlu0 %900
      %902 = vrot.lane.b32.xlu0 %v850, 108
      %v903 = vpop.permute.xlu0 %902
      %v904 = vsel %vm438, %v899, %v901
      %v905 = vsel %vm438, %v901, %v903
      %909 = vrot.lane.b32.xlu0 %v848, 92
      %v910 = vpop.permute.xlu0 %909
      %911 = vrot.lane.b32.xlu0 %v849, 92
      %v912 = vpop.permute.xlu0 %911
      %913 = vrot.lane.b32.xlu0 %v850, 92
      %v914 = vpop.permute.xlu0 %913
      %v915 = vsel %vm450, %v910, %v912
      %v916 = vsel %vm450, %v912, %v914
      %920 = vrot.lane.b32.xlu0 %v848, 91
      %v921 = vpop.permute.xlu0 %920
      %922 = vrot.lane.b32.xlu0 %v849, 91
      %v923 = vpop.permute.xlu0 %922
      %924 = vrot.lane.b32.xlu0 %v850, 91
      %v925 = vpop.permute.xlu0 %924
      %v926 = vsel %vm462, %v921, %v923
      %v927 = vsel %vm462, %v923, %v925
      %931 = vrot.lane.b32.xlu0 %v848, 90
      %v932 = vpop.permute.xlu0 %931
      %933 = vrot.lane.b32.xlu0 %v849, 90
      %v934 = vpop.permute.xlu0 %933
      %935 = vrot.lane.b32.xlu0 %v850, 90
      %v936 = vpop.permute.xlu0 %935
      %v937 = vsel %vm474, %v932, %v934
      %v938 = vsel %vm474, %v934, %v936
      %v943 = vunpack.c.l.b16 %v337
      %v944 = vunpack.c.h.b16 %v337
      %v945 = vpack.c.b16 %v943, %v943
      %v946 = vpack.c.b16 %v944, %v944
      %v949 = vsel %vm597, %v946, 0
      %951 = vmatpush.bf16.msra.mxu0 %v926
      %952 = vmatpush.bf16.msra.mxu0 %v915
      %953 = vmatpush.bf16.msra.mxu0 %v904
      %954 = vmatpush.bf16.msra.mxu0 %v893
      %955 = vmatpush.bf16.msra.mxu0 %v882
      %956 = vmatpush.bf16.msra.mxu0 %v871
      %957 = vmatpush.bf16.msra.mxu0 %v860
      %958 = vmatpush.bf16.msra.mxu0 %v848
      %959 = vmatmul.bf16.gmra.mxu0 %v945
      %v960 = vpop.f32.mrf.mxu0
      %v961 = vadd.f32 %v354, %v960
      %v962 = vpop.f32.mrf.mxu0
      %963 = vdwg.mxu0
      %964 = vmatpush.bf16.msra.mxu0 0
      %965 = vmatpush.bf16.msra.mxu0 0
      %966 = vmatpush.bf16.msra.mxu0 0
      %967 = vmatpush.bf16.msra.mxu0 0
      %968 = vmatpush.bf16.msra.mxu0 0
      %969 = vmatpush.bf16.msra.mxu0 0
      %970 = vmatpush.bf16.msra.mxu0 0
      %971 = vmatpush.bf16.msra.mxu0 %v937
      %972 = vmatmul.bf16.gmra.mxu0 %v949
      %v973 = vpop.f32.mrf.mxu0
      %v974 = vadd.f32 %v961, %v973
      %v975 = vpop.f32.mrf.mxu0
      %976 = vdwg.mxu0
      %977 = vmatpush.bf16.msra.mxu0 %v927
      %978 = vmatpush.bf16.msra.mxu0 %v916
      %979 = vmatpush.bf16.msra.mxu0 %v905
      %980 = vmatpush.bf16.msra.mxu0 %v894
      %981 = vmatpush.bf16.msra.mxu0 %v883
      %982 = vmatpush.bf16.msra.mxu0 %v872
      %983 = vmatpush.bf16.msra.mxu0 %v861
      %984 = vmatpush.bf16.msra.mxu0 %v849
      %985 = vmatmul.bf16.gmra.mxu0 %v945
      %v986 = vpop.f32.mrf.mxu0
      %v987 = vadd.f32 %v354, %v986
      %v988 = vpop.f32.mrf.mxu0
      %989 = vdwg.mxu0
      %990 = vmatpush.bf16.msra.mxu0 0
      %991 = vmatpush.bf16.msra.mxu0 0
      %992 = vmatpush.bf16.msra.mxu0 0
      %993 = vmatpush.bf16.msra.mxu0 0
      %994 = vmatpush.bf16.msra.mxu0 0
      %995 = vmatpush.bf16.msra.mxu0 0
      %996 = vmatpush.bf16.msra.mxu0 0
      %997 = vmatpush.bf16.msra.mxu0 %v938
      %998 = vmatmul.bf16.gmra.mxu0 %v949
      %v999 = vpop.f32.mrf.mxu0
      %v1000 = vadd.f32 %v987, %v999
      %v1001 = vpop.f32.mrf.mxu0
      %1002 = vdwg.mxu0
      %1003 = vmatpush.bf16.msra.mxu0 %v925
      %1004 = vmatpush.bf16.msra.mxu0 %v914
      %1005 = vmatpush.bf16.msra.mxu0 %v903
      %1006 = vmatpush.bf16.msra.mxu0 %v892
      %1007 = vmatpush.bf16.msra.mxu0 %v881
      %1008 = vmatpush.bf16.msra.mxu0 %v870
      %1009 = vmatpush.bf16.msra.mxu0 %v859
      %1010 = vmatpush.bf16.msra.mxu0 %v850
      %1011 = vmatmul.bf16.gmra.mxu0 %v945
      %v1012 = vpop.f32.mrf.mxu0
      %v1013 = vadd.f32 %v354, %v1012
      %v1014 = vpop.f32.mrf.mxu0
      %1015 = vdwg.mxu0
      %1016 = vmatpush.bf16.msra.mxu0 0
      %1017 = vmatpush.bf16.msra.mxu0 0
      %1018 = vmatpush.bf16.msra.mxu0 0
      %1019 = vmatpush.bf16.msra.mxu0 0
      %1020 = vmatpush.bf16.msra.mxu0 0
      %1021 = vmatpush.bf16.msra.mxu0 0
      %1022 = vmatpush.bf16.msra.mxu0 0
      %1023 = vmatpush.bf16.msra.mxu0 %v936
      %1024 = vmatmul.bf16.gmra.mxu0 %v949
      %v1025 = vpop.f32.mrf.mxu0
      %v1026 = vadd.f32 %v1013, %v1025
      %v1027 = vpop.f32.mrf.mxu0
      %1028 = vdwg.mxu0
      %v1029 = vmax.f32 %v974, 0.0
      %v1030 = vmax.f32 %v1000, 0.0
      %v1031 = vmax.f32 %v1026, 0.0
      %1032 = vst [vmem:[%s325] sm:$0xff] %v1029
      %1033 = vst [vmem:[%s325 + $0x8] sm:$0xff] %v1030
      %vm1034 = vcmask 261120
      %1035 = vst.msk [vmem:[%s325 + $0x10] sm:$0xff] %vm1034, %v1031
      %p1036 = scmp.lt.s32.totalorder %s19, 1
      %s1037 = scalar_select %p1036, %s19, 1
      %s1038 = smul.addr %s1037, 3
      %s1039 = smul.addr %s1038, 8
      %s1040 = scalar_lea.vmem %s8, %s1039
      // Predicated region
      $region53: #{up_forward.1} parent=51 // pred_check
        %p1041 = pneg %p215
      $region54: #{up_forward.1} parent=51 // pred_check_branch
        %1043 = sbr.rel (%p1041) target = $region56
      $region55: #{up_forward.1} parent=51 // pred_region
        _
      $region56: #{up_forward.1} parent=51 // pred_fallthru
        _
    $region52: #{up_forward.1} parent=5 // pred_fallthru
      _
    %p1044 = scmp.le.s32.totalorder 2, %s14
    // Predicated region
    $region57: #{up_forward.1} parent=5 // pred_check
      %p1045 = pneg %p1044
    $region58: #{up_forward.1} parent=5 // pred_check_branch
      %1047 = sbr.rel (%p1045) target = $region60
    $region59: #{up_forward.1} parent=5 // pred_region
      %s1048 = ssub.s32 %s14, 2
      // Predicated region
      $region61: #{up_forward.1} parent=59 // pred_check
        %p1049 = pneg %p221
      $region62: #{up_forward.1} parent=59 // pred_check_branch
        %1051 = sbr.rel (%p1049) target = $region64
      $region63: #{up_forward.1} parent=59 // pred_region
        %p1052 = scmp.lt.s32.totalorder %s20, 1
        %s1053 = scalar_select %p1052, %s20, 1
        %s1054 = smul.addr %s1053, 3
        %s1055 = smul.addr %s1054, 8
        %s1056 = scalar_lea.vmem %s8, %s1055
      $region64: #{up_forward.1} parent=59 // pred_fallthru
        _
    $region60: #{up_forward.1} parent=5 // pred_fallthru
      _
  $region6: #{up_forward.1} parent=0 // loop_footer
    %s18 = sadd.s32 1, %s14
  $region7: #{up_forward.1} parent=0 // loop_footer_branch
    %13 = sbr.rel target = $region3
  $region8: #{up_forward.1} parent=0 // loop_exit
    _

</llo_original>
